<compile_context>
chip_gen: v7x
topology: tpu7x:2x2x1
jax: 0.10.0
libtpu: 0.0.40
codegen_flags: <defaults>
</compile_context>

<pallas_src>
import functools

import numpy as np
import jax
import jax.numpy as jnp
from jax.experimental import pallas as pl
from jax.experimental.pallas import tpu as pltpu

# BERT special-token ids (bert-base-uncased vocab)
CLS_ID = 101
SEP_ID = 102
PAD_ID = 0


def _bert_pack_kernel(tok_ref, len_ref, out_ref, *, max_content):
    """Build padded input_ids rows for one batch tile.

    tok_ref : (tb, Lpad) int{16,32}/uint{16,32} — raw wordpiece ids (lane-dense).
    len_ref : (tb, 1)    int32 — raw wordpiece count per example.
    out_ref : (tb, Lpad) int32 — [CLS] content... [SEP] PAD... per row.
    max_content : python int — min(max_length - 2, available raw columns).
    """
    tb, lpad = out_ref.shape

    # truncation=True, max_length  ->  at most max_content content tokens
    n = jnp.minimum(len_ref[...], max_content)               # (tb, 1) int32

    # in-vreg upcast (16-bit ids stay narrow in HBM/DMA, widen only here)
    content = tok_ref[...].astype(jnp.int32)                 # (tb, Lpad)

    # shift right by one output slot so raw column j lands in output column j+1
    shifted = pltpu.roll(content, shift=1, axis=1)            # XLU slot, ~free
    pos = jax.lax.broadcasted_iota(jnp.int32, (tb, lpad), 1)  # (tb, Lpad)

    out = jnp.where(pos == 0, CLS_ID,
          jnp.where(pos <= n, shifted,
          jnp.where(pos == n + 1, SEP_ID, PAD_ID)))
    out_ref[...] = out.astype(out_ref.dtype)


def _pick_tile_rows(B, block_rows):
    """Batch-tile rows: 32-aligned (covers int16/int8 sublane tiling), >=2 grid
    steps (usually 4) when B > 32 so the pipeline / both v7x TCs get fed."""
    ALIGN = 32
    if B <= ALIGN:
        return B                                  # single block, full batch dim
    tb = -(-B // 4)                               # aim for ~4 grid steps
    tb = ((tb + ALIGN - 1) // ALIGN) * ALIGN
    cap = max(ALIGN, (int(block_rows) // ALIGN) * ALIGN)
    return min(tb, cap)


def _bert_pack_ids(raw_ids, lengths, max_length, block_rows):
    """Lane-dense packing kernel body (call under jit). Returns (B, Lpad) int32,
    Lpad = max_length rounded up to 128."""
    B, Lr = raw_ids.shape
    L = int(max_length)
    lpad = ((L + 127) // 128) * 128               # lane-dense output width
    avail = min(Lr, lpad)                         # raw columns actually readable

    # keep 16-bit ids narrow (halves input HBM traffic); upcast happens in-kernel
    ok_dtypes = (jnp.dtype(jnp.int32), jnp.dtype(jnp.uint32),
                 jnp.dtype(jnp.int16), jnp.dtype(jnp.uint16))
    if raw_ids.dtype not in ok_dtypes:
        raw_ids = raw_ids.astype(jnp.int32)       # fused under the surrounding jit
    lengths = lengths.reshape(B, 1).astype(jnp.int32)

    if Lr < lpad:
        # narrow raw buffer: widen once inside the jit (tiny; keeps the kernel a
        # single unmasked-store code path with no VMEM scratch)
        raw_ids = jnp.pad(raw_ids, ((0, 0), (0, lpad - Lr)))
    # if Lr > lpad the input BlockSpec below only DMAs the first lpad lanes
    # (truncation happens in the input DMA, for free).

    tb = _pick_tile_rows(B, block_rows)
    grid = (pl.cdiv(B, tb),)

    kernel = functools.partial(_bert_pack_kernel, max_content=min(L - 2, avail))

    bytes_accessed = B * lpad * raw_ids.dtype.itemsize + B * lpad * 4 + B * 4
    return pl.pallas_call(
        kernel,
        out_shape=jax.ShapeDtypeStruct((B, lpad), jnp.int32),
        grid=grid,
        in_specs=[
            pl.BlockSpec((tb, lpad), lambda i: (i, 0)),
            pl.BlockSpec((tb, 1), lambda i: (i, 0)),
        ],
        out_specs=pl.BlockSpec((tb, lpad), lambda i: (i, 0)),
        compiler_params=pltpu.CompilerParams(
            dimension_semantics=("parallel",)),
        cost_estimate=pl.CostEstimate(
            flops=4 * B * lpad, transcendentals=0, bytes_accessed=bytes_accessed),
    )(raw_ids, lengths)


@functools.partial(jax.jit, static_argnames=("max_length", "block_rows"))
def bert_pack_ids(raw_ids, lengths, max_length=77, block_rows=2048):
    """Returns the lane-dense (B, 128*k) int32 slab (preferred for jitted consumers)."""
    return _bert_pack_ids(raw_ids, lengths, max_length, block_rows)


@functools.partial(jax.jit, static_argnames=("max_length", "block_rows"))
def bert_tokenizer_forward(raw_ids, lengths, max_length=77, block_rows=2048):
    """Pallas analogue of BERTTokenizer.forward.

    raw_ids : (B, Lr) int32/int16/uint16 wordpiece ids (already looked up;
              values past `lengths` are ignored; lengths should be <= min(Lr, 128*k))
    lengths : (B,) or (B, 1) int valid wordpiece count per example
    returns : (B, max_length) int32 input_ids
              (PyTorch returns int64; JAX default integer dtype is int32)
    """
    out = _bert_pack_ids(raw_ids, lengths, max_length, block_rows)
    # slice fuses inside this jit (no extra launch / HBM round trip); consumers
    # that can take the lane-dense 128-wide slab should call bert_pack_ids instead.
    return out[:, :int(max_length)]


class BERTTokenizerPallas:
    """Mirrors BERTTokenizer(vq_interface=True, max_length=...).

    forward/encode operate on pre-tokenized wordpiece ids + lengths, since the
    string -> wordpiece step has no tensor/Pallas equivalent.
    """
    # TODO(synk): WordPiece string tokenization (HF BertTokenizerFast) has no Pallas
    # equivalent; the kernel covers the truncate/[CLS]/[SEP]/pad tensor semantics.

    def __init__(self, vq_interface=True, max_length=77):
        self.vq_interface = vq_interface
        self.max_length = max_length

    def __call__(self, raw_ids, lengths):
        return self.forward(raw_ids, lengths)

    def forward(self, raw_ids, lengths):
        return bert_tokenizer_forward(raw_ids, lengths, max_length=self.max_length)

    def encode(self, raw_ids, lengths):
        tokens = self.forward(raw_ids, lengths)
        if not self.vq_interface:
            return tokens
        return (None, None, [None, None, tokens])


def _reference(raw_ids, lengths, max_length):
    raw_ids = np.asarray(raw_ids)
    lengths = np.asarray(lengths).reshape(-1)
    B, Lr = raw_ids.shape
    lpad = ((max_length + 127) // 128) * 128
    out = np.zeros((B, max_length), dtype=np.int32)
    for b in range(B):
        n = int(min(lengths[b], max_length - 2, min(Lr, lpad)))
        out[b, 0] = CLS_ID
        out[b, 1:1 + n] = raw_ids[b, :n]
        out[b, 1 + n] = SEP_ID
    return out


if __name__ == "__main__":
    key = jax.random.PRNGKey(0)
    k1, k2, k3, k4, k5 = jax.random.split(key, 5)

    # case 1: small batch, raw width < 128 (jit-fused pad path), single block
    B1, max_len1, raw_w1 = 2, 16, 8
    raw1 = jax.random.randint(k1, (B1, raw_w1), 1000, 30000, dtype=jnp.int32)
    len1 = jnp.array([5, 8], dtype=jnp.int32)

    tok = BERTTokenizerPallas(vq_interface=True, max_length=max_len1)
    _, _, (_, _, tokens1) = tok.encode(raw1, len1)
    tokens1 = jax.block_until_ready(tokens1)
    np.testing.assert_array_equal(np.asarray(tokens1), _reference(raw1, len1, max_len1))

    # case 2: raw width >= 128 (in-DMA truncation), length > max_length-2 (truncation)
    B2, max_len2, raw_w2 = 16, 77, 160
    raw2 = jax.random.randint(k2, (B2, raw_w2), 1000, 30000, dtype=jnp.int32)
    len2 = jax.random.randint(k3, (B2,), 1, 76, dtype=jnp.int32)
    len2 = len2.at[0].set(100)                          # forces truncation to 75

    tokens2 = jax.block_until_ready(
        bert_tokenizer_forward(raw2, len2, max_length=max_len2))
    assert tokens2.shape == (B2, max_len2)
    np.testing.assert_array_equal(np.asarray(tokens2), _reference(raw2, len2, max_len2))

    # case 3: int16 ids (in-kernel upcast), multi-step grid with a partial last block
    B3, max_len3, raw_w3 = 48, 77, 130
    raw3 = jax.random.randint(k4, (B3, raw_w3), 1000, 30000,
                              dtype=jnp.int32).astype(jnp.int16)
    len3 = jax.random.randint(k5, (B3,), 1, 76, dtype=jnp.int32)

    tokens3 = jax.block_until_ready(
        bert_tokenizer_forward(raw3, len3, max_length=max_len3))
    np.testing.assert_array_equal(np.asarray(tokens3), _reference(raw3, len3, max_len3))

    # lane-dense slab path (what jitted consumers should use)
    slab3 = jax.block_until_ready(bert_pack_ids(raw3, len3, max_length=max_len3))
    assert slab3.shape == (B3, 128)
    np.testing.assert_array_equal(np.asarray(slab3[:, :max_len3]),
                                  _reference(raw3, len3, max_len3))

    print("KERNEL_OK")
</pallas_src>

<mosaic_0001>
module attributes {stable_mosaic.version = 11 : i64} {
  func.func @_bert_pack_kernel(%arg0: i32, %arg1: memref<2x128xi32, #tpu.memory_space<vmem>>, %arg2: memref<2x1xi32, #tpu.memory_space<vmem>>, %arg3: memref<2x128xi32, #tpu.memory_space<vmem>>) attributes {dimension_semantics = [#tpu.dimension_semantics<parallel>], iteration_bounds = array<i64: 1>, scalar_prefetch = 0 : i64, scratch_operands = 0 : i64, tpu.core_type = #tpu.core_type<tc>, window_params = [{transform_indices = @transform_0, window_bounds = array<i64: 2, 128>}, {transform_indices = @transform_1, window_bounds = array<i64: 2, 1>}, {transform_indices = @transform_2, window_bounds = array<i64: 2, 128>}]} {
    %c0 = arith.constant 0 : index
    %c0_0 = arith.constant 0 : index
    %0 = vector.load %arg2[%c0, %c0_0] : memref<2x1xi32, #tpu.memory_space<vmem>>, vector<2x1xi32>
    %c8_i32 = arith.constant 8 : i32
    %1 = vector.broadcast %c8_i32 : i32 to vector<2x1xi32>
    %2 = arith.minsi %0, %1 : vector<2x1xi32>
    %c0_1 = arith.constant 0 : index
    %c0_2 = arith.constant 0 : index
    %3 = vector.load %arg1[%c0_1, %c0_2] : memref<2x128xi32, #tpu.memory_space<vmem>>, vector<2x128xi32>
    %c1_i32 = arith.constant 1 : i32
    %4 = tpu.dynamic_rotate %3 by %c1_i32 dim 1 : vector<2x128xi32>, i32 -> vector<2x128xi32>
    %5 = tpu.iota {dimensions = array<i32: 1>} : vector<2x128xi32>
    %c0_i32 = arith.constant 0 : i32
    %6 = vector.broadcast %c0_i32 : i32 to vector<2x128xi32>
    %7 = arith.cmpi eq, %5, %6 : vector<2x128xi32>
    %8 = vector.broadcast %2 : vector<2x1xi32> to vector<2x128xi32>
    %9 = arith.cmpi sle, %5, %8 : vector<2x128xi32>
    %c1_i32_3 = arith.constant 1 : i32
    %10 = vector.broadcast %c1_i32_3 : i32 to vector<2x1xi32>
    %11 = arith.addi %2, %10 : vector<2x1xi32>
    %12 = vector.broadcast %11 : vector<2x1xi32> to vector<2x128xi32>
    %13 = arith.cmpi eq, %5, %12 : vector<2x128xi32>
    %c102_i32 = arith.constant 102 : i32
    %c0_i32_4 = arith.constant 0 : i32
    %14 = vector.broadcast %c102_i32 : i32 to vector<2x128xi32>
    %15 = vector.broadcast %c0_i32_4 : i32 to vector<2x128xi32>
    %16 = arith.select %13, %14, %15 : vector<2x128xi1>, vector<2x128xi32>
    %17 = arith.select %9, %4, %16 : vector<2x128xi1>, vector<2x128xi32>
    %c101_i32 = arith.constant 101 : i32
    %18 = vector.broadcast %c101_i32 : i32 to vector<2x128xi32>
    %19 = arith.select %7, %18, %17 : vector<2x128xi1>, vector<2x128xi32>
    %c0_5 = arith.constant 0 : index
    %c0_6 = arith.constant 0 : index
    %20 = vector.load %arg3[%c0_5, %c0_6] : memref<2x128xi32, #tpu.memory_space<vmem>>, vector<2x128xi32>
    tpu.vector_store %arg3[%c0_5, %c0_6], %19 {strides = array<i32>} : memref<2x128xi32, #tpu.memory_space<vmem>>, vector<2x128xi32>,
    return
  }
  func.func @transform_0(%arg0: i32) -> (i32, i32) {
    %c0_i32 = arith.constant 0 : i32
    %c0_i32_0 = arith.constant 0 : i32
    return %arg0, %c0_i32 : i32, i32
  }
  func.func @transform_1(%arg0: i32) -> (i32, i32) {
    %c0_i32 = arith.constant 0 : i32
    %c0_i32_0 = arith.constant 0 : i32
    return %arg0, %c0_i32 : i32, i32
  }
  func.func @transform_2(%arg0: i32) -> (i32, i32) {
    %c0_i32 = arith.constant 0 : i32
    %c0_i32_0 = arith.constant 0 : i32
    return %arg0, %c0_i32 : i32, i32
  }
}

</mosaic_0001>

<llo_original>
// kernel: bert_tokenizer_forward.1
$region0: #{bert_tokenizer_forward.1}
  #allocation0 [shape = 'u32[]', space=smem, size = 0x4, offset = 0x4, fixed_abs, tag = 'smem constant byte address 0x4 - core index']
  #allocation1 [shape = 'u32[144,128]{1,0:T(1,128)}', space=vmem, size = 0x12000, scoped, tag = 'internal scratch']
  %s0 = inlined_call_operand.vmem [shape: s32[2,128], index: 0, kind: input, shape index: {}]
  %s1 = inlined_call_operand.vmem [shape: s32[2,1], index: 1, kind: input, shape index: {}]
  %s2 = inlined_call_operand.hbm [shape: s32[2,128], index: 2, kind: output, shape index: {}]
  %s3 = sld [smem:[#allocation0]]
  $region18: #{bert_tokenizer_forward.1} parent=0
    _
  %s5 = ssub.s32 1, %s3
  %s6 = scalar_select 0, %s5, %s3
  $region1: #{bert_tokenizer_forward.1} parent=0
    #allocation2 [shape = 'u8[1024]{0}', space=vmem, size = 0x400, scoped, tag = 'output window, operand 0, single buffered']
    #allocation3 [shape = 's32[1]{0}', space=sflag, size = 0x4, scoped, tag = 'scoped memory for bert_tokenizer_forward.1']
    %7 = vsyncpa [#allocation3], 0
    // Predicated region
    $region2: #{bert_tokenizer_forward.1} parent=1 // pred_check
      _
    $region3: #{bert_tokenizer_forward.1} parent=1 // pred_check_branch
      %9 = sbr.rel (0) target = $region5
    $region4: #{bert_tokenizer_forward.1} parent=1 // pred_region
      _
    $region5: #{bert_tokenizer_forward.1} parent=1 // pred_fallthru
      _
    // Predicated region
    $region6: #{bert_tokenizer_forward.1} parent=1 // pred_check
      _
    $region7: #{bert_tokenizer_forward.1} parent=1 // pred_check_branch
      %11 = sbr.rel (0) target = $region9
    $region8: #{bert_tokenizer_forward.1} parent=1 // pred_region
      _
    $region9: #{bert_tokenizer_forward.1} parent=1 // pred_fallthru
      _
    %v12 = vld [vmem:[%s1] sm:$0x3]
    %vm13 = vcmp.lt.s32.totalorder %v12, 8
    %v14 = vsel %vm13, %v12, 8
    %v15 = vld [vmem:[%s0] sm:$0x3]
    %16 = vrot.lane.b32.xlu0 %v15, 1
    %v17 = vpop.permute.xlu0 %16
    %v18 = vlaneseq
    %v19 = vand.u32 %v18, 127
    %vm20 = vcmp.eq.s32.totalorder %v19, 0
    %21 = vset.pattern.permute.xlu0 0
    %22 = vperm.xlu0 %21, %v14
    %v23 = vpop.permute.xlu0 %22
    %vm24 = vcmp.le.s32.totalorder %v19, %v23
    %v25 = vadd.s32 %v14, 1
    %26 = vset.pattern.permute.xlu0 0
    %27 = vperm.xlu0 %26, %v25
    %v28 = vpop.permute.xlu0 %27
    %vm29 = vcmp.eq.s32.totalorder %v19, %v28
    %v30 = vsel %vm29, 102, 0
    %v31 = vsel %vm24, %v17, %v30
    %v32 = vsel %vm20, 101, %v31
    %33 = vst [vmem:[#allocation2] sm:$0x3] %v32
    // Predicated region
    $region10: #{bert_tokenizer_forward.1} parent=1 // pred_check
      _
    $region11: #{bert_tokenizer_forward.1} parent=1 // pred_check_branch
      %35 = sbr.rel (0) target = $region13
    $region12: #{bert_tokenizer_forward.1} parent=1 // pred_region
      %s37 = ssub.s32 32, 32
      %38 = vsyncadd [#allocation3], %s37
      %s40 = sshll.u32 [#allocation2], 4
      %s41 = int_to_ptr.vmem [resolvable:$true] %s40
      %43 = dma.vmem_to_hbm [thread:$0]  %s41, 32, %s2, [#allocation3]
    $region13: #{bert_tokenizer_forward.1} parent=1 // pred_fallthru
      _
    // Predicated region
    $region14: #{bert_tokenizer_forward.1} parent=1 // pred_check
      _
    $region15: #{bert_tokenizer_forward.1} parent=1 // pred_check_branch
      %45 = sbr.rel (0) target = $region17
    $region16: #{bert_tokenizer_forward.1} parent=1 // pred_region
      %46 = dma.done [#allocation3], 32
    $region17: #{bert_tokenizer_forward.1} parent=1 // pred_fallthru
      _
    %47 = vsyncpa [#allocation3], 1

</llo_original>
